<compile_context>
chip_gen: v7x
topology: tpu7x:2x2x1
jax: 0.10.0
libtpu: 0.0.40
codegen_flags: <defaults>
</compile_context>

<pallas_src>
import jax
import jax.numpy as jnp
from jax import lax
from jax.experimental import pallas as pl
from jax.experimental.pallas import tpu as pltpu


def _round_up(x, m):
    return (x + m - 1) // m * m


def _cdiv(a, b):
    return -(-a // b)


def _physical_vmem_bytes():
    """Per-core VMEM capacity; conservative (v7x) fallback if unknown."""
    try:
        info = pltpu.get_tpu_info()
        v = getattr(info, "vmem_capacity_bytes", None)
        if v:
            return int(v)
    except Exception:
        pass
    return 64 * 1024 * 1024


def _choose_tb(batch, rows_per_step, n_for_onehot=None):
    """Rows gathered per grid step: multiple of 8, bounded one-hot temp,
    and small enough that the grid has >=2 steps (v7x has 2 TensorCores)."""
    tb = int(rows_per_step)
    if n_for_onehot is not None:
        # keep the (TB, N) fp32 one-hot temporary <= ~2 MiB
        tb = min(tb, max(8, (2 * 1024 * 1024 // 4) // max(int(n_for_onehot), 1)))
    tb = min(tb, max(8, _cdiv(int(batch), 2)))
    return _round_up(max(tb, 1), 8)


# ---------------------------------------------------------------------------
# Path A: VMEM-resident (lane-padded) table, gather via one-hot matmul on MXU.
# ---------------------------------------------------------------------------
def _onehot_gather_kernel(idx_ref, w_ref, out_ref):
    # idx_ref: (TB, 1) int32 tile of indices (VMEM)
    # w_ref:   (N_pad, D_pad) full padded weight table (resident, same block)
    # out_ref: (TB, D_pad) lane-dense output tile
    n = w_ref.shape[0]
    tb = idx_ref.shape[0]
    idx = idx_ref[...]                                        # (TB, 1) int32
    cols = lax.broadcasted_iota(jnp.int32, (tb, n), 1)        # (TB, N_pad)
    onehot = (idx == cols).astype(w_ref.dtype)                # (TB, N_pad)
    out_ref[...] = jnp.dot(
        onehot, w_ref[...], preferred_element_type=jnp.float32
    ).astype(out_ref.dtype)


def _lookup_vmem_table(weight_padded, flat_idx, tb, vmem_limit_bytes):
    n_pad, d_pad = weight_padded.shape
    b = flat_idx.shape[0]
    b_pad = _round_up(b, tb)
    idx_pad = jnp.zeros((b_pad, 1), jnp.int32).at[:b, 0].set(flat_idx)

    itemsize = jnp.dtype(weight_padded.dtype).itemsize
    cost = pl.CostEstimate(
        flops=int(2 * b_pad * n_pad * d_pad),
        transcendentals=0,
        bytes_accessed=int(n_pad * d_pad * itemsize + b_pad * 4
                           + b_pad * d_pad * itemsize),
    )

    out = pl.pallas_call(
        _onehot_gather_kernel,
        out_shape=jax.ShapeDtypeStruct((b_pad, d_pad), weight_padded.dtype),
        grid=(b_pad // tb,),
        in_specs=[
            pl.BlockSpec((tb, 1), lambda i: (i, 0)),        # index tile
            pl.BlockSpec((n_pad, d_pad), lambda i: (0, 0)), # full table, stays put
        ],
        out_specs=pl.BlockSpec((tb, d_pad), lambda i: (i, 0)),
        compiler_params=pltpu.CompilerParams(
            dimension_semantics=("parallel",),   # batch axis -> both v7x TCs
            vmem_limit_bytes=int(vmem_limit_bytes),
        ),
        cost_estimate=cost,
    )(idx_pad, weight_padded)
    return out[:b]


# ---------------------------------------------------------------------------
# Path B: table stays in HBM; row DMAs go straight into the output tile.
# ---------------------------------------------------------------------------
def _make_dma_gather_kernel(rows_per_step):
    def kernel(idx_ref, w_hbm, out_ref, sems):
        # idx_ref: (B_pad,) int32 in SMEM (scalar prefetch)
        # w_hbm:   (N, D) weight table, memory_space=pl.ANY (left in HBM)
        # out_ref: (TB, D) output tile -- DMA destinations, no vector stores
        # sems:    (TB,) DMA semaphores
        base = pl.program_id(0) * rows_per_step

        # Read all indices from SMEM and build every descriptor BEFORE any
        # start/wait (waits break SMEM sst->sld forwarding); then keep all TB
        # row DMAs in flight simultaneously to hide random-row HBM latency.
        copies = []
        for r in range(rows_per_step):
            row = idx_ref[base + r]
            copies.append(
                pltpu.make_async_copy(
                    w_hbm.at[pl.ds(row, 1), :],
                    out_ref.at[pl.ds(r, 1), :],
                    sems.at[r],
                )
            )
        for c in copies:
            c.start()
        for c in copies:
            c.wait()

    return kernel


def _lookup_hbm_table(weight, flat_idx, tb, vmem_limit_bytes):
    n, d = weight.shape
    b = flat_idx.shape[0]
    b_pad = _round_up(b, tb)
    # Padded tail indices are 0 -> harmless in-bounds DMAs, rows sliced off.
    idx_pad = jnp.zeros((b_pad,), jnp.int32).at[:b].set(flat_idx)

    itemsize = jnp.dtype(weight.dtype).itemsize
    cost = pl.CostEstimate(
        flops=0,
        transcendentals=0,
        bytes_accessed=int(2 * b_pad * d * itemsize + b_pad * 4),
    )

    out = pl.pallas_call(
        _make_dma_gather_kernel(tb),
        out_shape=jax.ShapeDtypeStruct((b_pad, d), weight.dtype),
        grid_spec=pltpu.PrefetchScalarGridSpec(
            num_scalar_prefetch=1,                        # indices -> SMEM
            grid=(b_pad // tb,),
            in_specs=[pl.BlockSpec(memory_space=pl.ANY)], # table stays in HBM
            out_specs=pl.BlockSpec((tb, d), lambda i, idx: (i, 0)),
            scratch_shapes=[pltpu.SemaphoreType.DMA((tb,))],
        ),
        compiler_params=pltpu.CompilerParams(
            dimension_semantics=("parallel",),
            vmem_limit_bytes=int(vmem_limit_bytes),
        ),
        cost_estimate=cost,
    )(idx_pad, weight)
    return out[:b]


# ---------------------------------------------------------------------------
# Public wrapper (forward of PoincareEmbedding: W(x))
# ---------------------------------------------------------------------------
def poincare_embedding_lookup(weight, indices, *, rows_per_step=128,
                              force_hbm_gather=False):
    """Gather rows of `weight` at `indices` (== nn.Embedding forward).

    weight:  (N, D) float32 points inside the Poincare ball
    indices: integer array of any shape; clamped to [0, N)
    returns: array of shape indices.shape + (D,)
    """
    n, d = weight.shape
    flat_idx = jnp.clip(indices.reshape(-1).astype(jnp.int32), 0, n - 1)
    b = int(flat_idx.shape[0])

    phys_vmem = _physical_vmem_bytes()
    # Scoped VMEM request: half of physical, capped at 64 MiB.
    # v7x -> 32 MiB, v5e/v6e -> 64 MiB (raises v5e's 16 MiB default).
    vmem_limit = int(min(phys_vmem // 2, 64 * 1024 * 1024))

    d_pad = _round_up(d, 128)   # lane-dense output for the resident path
    n_pad = _round_up(n, 8)
    itemsize = jnp.dtype(weight.dtype).itemsize
    table_padded_bytes = n_pad * d_pad * itemsize

    # Resident-table path only when the double-buffered padded table uses at
    # most a quarter of the scoped budget (leaves room for one-hot temps and
    # the double-buffered index/output blocks), and N is small enough that the
    # one-hot work stays cheap.
    use_vmem_table = (
        (not force_hbm_gather)
        and 2 * table_padded_bytes <= vmem_limit // 4
        and n_pad <= 16384
    )

    if use_vmem_table:
        tb = _choose_tb(b, rows_per_step, n_for_onehot=n_pad)
        if (n_pad, d_pad) == (n, d):
            w_pad = weight
        else:
            w_pad = jnp.zeros((n_pad, d_pad), weight.dtype).at[:n, :d].set(weight)
        out = _lookup_vmem_table(w_pad, flat_idx, tb, vmem_limit)[:, :d]
    else:
        # Manual-DMA path: keep <= 32 row DMAs in flight per step.
        tb = _choose_tb(b, min(rows_per_step, 32))
        out = _lookup_hbm_table(weight, flat_idx, tb, vmem_limit)

    return out.reshape(indices.shape + (d,))


class PoincareEmbeddingPallas:
    """JAX/Pallas port of PoincareEmbedding (forward = embedding lookup W(x))."""

    def __init__(self, n_exemple, size=10, key=None):
        self.N = n_exemple
        self.size = size
        if key is None:
            key = jax.random.PRNGKey(0)
        # Small uniform init strictly inside the Poincare ball (mirrors the
        # 1e-3-scale init of poincare_module.PoincareEmbedding).
        self.weight = jax.random.uniform(
            key, (n_exemple, size), dtype=jnp.float32, minval=-1e-3, maxval=1e-3
        )

    def __call__(self, x):
        return poincare_embedding_lookup(self.weight, x)

    def get_PoincareEmbeddings(self):
        # Identity gather over arange(N) == the table itself; no kernel launch.
        return jax.lax.stop_gradient(self.weight)

    # TODO(synk): fit()/optimizer/negative sampling are a Riemannian-SGD training
    # loop (not part of the forward pass) and are not ported.


if __name__ == "__main__":
    key = jax.random.PRNGKey(0)
    k_w, k_idx = jax.random.split(key)

    # Small shapes consistent with the module: n_exemple=16 nodes, size=32,
    # a batch of 2 sequences of 8 indices (as the dataloader in fit() yields).
    N, D = 16, 32
    batch, seq = 2, 8

    model = PoincareEmbeddingPallas(N, size=D, key=k_w)
    x = jax.random.randint(k_idx, (batch, seq), 0, N, dtype=jnp.int32)

    ref = jnp.take(model.weight, x, axis=0)

    # Path A: VMEM-resident padded table, one-hot MXU gather (default here).
    out_vmem = jax.block_until_ready(model(x))
    assert out_vmem.shape == (batch, seq, D)
    assert jnp.allclose(out_vmem, ref)

    # Path B: HBM table + direct-to-output row-DMA gather (used for large tables).
    out_hbm = jax.block_until_ready(
        poincare_embedding_lookup(model.weight, x, force_hbm_gather=True)
    )
    assert out_hbm.shape == (batch, seq, D)
    assert jnp.allclose(out_hbm, ref)

    # get_PoincareEmbeddings(): identity gather short-circuits to the table.
    all_emb = jax.block_until_ready(model.get_PoincareEmbeddings())
    assert all_emb.shape == (N, D)
    assert jnp.allclose(all_emb, model.weight)

    print("KERNEL_OK")
</pallas_src>

<mosaic_0001>
module attributes {stable_mosaic.version = 11 : i64} {
  func.func @_onehot_gather_kernel(%arg0: i32, %arg1: memref<8x1xi32, #tpu.memory_space<vmem>>, %arg2: memref<16x128xf32, #tpu.memory_space<vmem>>, %arg3: memref<8x128xf32, #tpu.memory_space<vmem>>) attributes {dimension_semantics = [#tpu.dimension_semantics<parallel>], iteration_bounds = array<i64: 2>, scalar_prefetch = 0 : i64, scratch_operands = 0 : i64, tpu.core_type = #tpu.core_type<tc>, window_params = [{transform_indices = @transform_0, window_bounds = array<i64: 8, 1>}, {pipeline_mode = #tpu.pipeline_mode<synchronous>, transform_indices = @transform_1, window_bounds = array<i64: 16, 128>}, {transform_indices = @transform_2, window_bounds = array<i64: 8, 128>}]} {
    %c0 = arith.constant 0 : index
    %c0_0 = arith.constant 0 : index
    %0 = vector.load %arg1[%c0, %c0_0] : memref<8x1xi32, #tpu.memory_space<vmem>>, vector<8x1xi32>
    %1 = tpu.iota {dimensions = array<i32: 1>} : vector<8x16xi32>
    %2 = vector.broadcast %0 : vector<8x1xi32> to vector<8x16xi32>
    %3 = arith.cmpi eq, %2, %1 : vector<8x16xi32>
    %4 = arith.extui %3 : vector<8x16xi1> to vector<8x16xi32>
    %5 = arith.sitofp %4 : vector<8x16xi32> to vector<8x16xf32>
    %c0_1 = arith.constant 0 : index
    %c0_2 = arith.constant 0 : index
    %6 = vector.load %arg2[%c0_1, %c0_2] : memref<16x128xf32, #tpu.memory_space<vmem>>, vector<16x128xf32>
    %cst = arith.constant dense<0.000000e+00> : vector<8x128xf32>
    %7 = tpu.matmul %5, %6, %cst {dimension_numbers = #tpu.dot_dimension_numbers<[1], [0], [0], [1], [0, 0, 1, 1], [], []>} : vector<8x16xf32>, vector<16x128xf32>, vector<8x128xf32> -> vector<8x128xf32>
    %c0_3 = arith.constant 0 : index
    %c0_4 = arith.constant 0 : index
    %8 = vector.load %arg3[%c0_3, %c0_4] : memref<8x128xf32, #tpu.memory_space<vmem>>, vector<8x128xf32>
    tpu.vector_store %arg3[%c0_3, %c0_4], %7 {strides = array<i32>} : memref<8x128xf32, #tpu.memory_space<vmem>>, vector<8x128xf32>,
    return
  }
  func.func @transform_0(%arg0: i32) -> (i32, i32) {
    %c0_i32 = arith.constant 0 : i32
    %c0_i32_0 = arith.constant 0 : i32
    return %arg0, %c0_i32 : i32, i32
  }
  func.func @transform_1(%arg0: i32) -> (i32, i32) {
    %c0_i32 = arith.constant 0 : i32
    %c0_i32_0 = arith.constant 0 : i32
    %c0_i32_1 = arith.constant 0 : i32
    return %c0_i32, %c0_i32_0 : i32, i32
  }
  func.func @transform_2(%arg0: i32) -> (i32, i32) {
    %c0_i32 = arith.constant 0 : i32
    %c0_i32_0 = arith.constant 0 : i32
    return %arg0, %c0_i32 : i32, i32
  }
}

</mosaic_0001>

<llo_original>
// kernel: tpu_custom_call.1
$region0: #{tpu_custom_call.1}
  #allocation0 [shape = 'u32[]', space=smem, size = 0x4, offset = 0x4, fixed_abs, tag = 'smem constant byte address 0x4 - core index']
  #allocation1 [shape = 'u32[144,128]{1,0:T(1,128)}', space=vmem, size = 0x12000, scoped, tag = 'internal scratch']
  %s0 = inlined_call_operand.vmem [shape: s32[16,1], index: 0, kind: input, shape index: {}]
  %s1 = inlined_call_operand.vmem [shape: f32[16,128], index: 1, kind: input, shape index: {}]
  %s2 = inlined_call_operand.hbm [shape: f32[16,128], index: 2, kind: output, shape index: {}]
  %s3 = sld [smem:[#allocation0]]
  $region41: #{tpu_custom_call.1} parent=0
    _
  %s5 = ssub.s32 1, %s3
  %s6 = scalar_select 0, %s5, %s3
  $region1: #{tpu_custom_call.1} parent=0
    #allocation2 [shape = 'u8[8192]{0}', space=vmem, size = 0x2000, scoped, tag = 'output window, operand 0']
    #allocation3 [shape = 's32[2]{0}', space=sflag, size = 0x8, scoped, tag = 'scoped memory for tpu_custom_call.1']
    %7 = vsyncpa [#allocation3], 0
    %s8 = scalar_lea.sflag [#allocation3], 1
    %9 = vsyncpa %s8, 0
    loop: start=0, step=1, limit=4
    $region2: #{tpu_custom_call.1} parent=1 // loop_pre_header
      _
    $region3: #{tpu_custom_call.1} parent=1 // loop_header
      %s11 = sphi 0, %s15
      %p12 = scmp.ge.s32.totalorder %s11, 4
      %s21 = sphi 0, %s23
      %s24 = sphi 0, %s21
      %s25 = sphi 0, %s24
      %s41 = sphi 0, %s25
      %s45 = sphi 0, %s45
      %s47 = sphi 0, %s45
      %s48 = sphi 0, %s47
      %s62 = sphi 0, %s48
      %s68 = sphi 0, %s70
      %s71 = sphi 0, %s68
      %s72 = sphi 0, %s71
      %s88 = sphi 0, %s72
    $region4: #{tpu_custom_call.1} parent=1 // loop_header_branch
      %14 = sbr.rel (%p12) target = $region8
    $region5: #{tpu_custom_call.1} parent=1 // loop_body
      %s16 = ssub.s32 %s11, 1
      %s17 = ssub.s32 %s11, 2
      %s18 = sadd.s32 %s11, 1
      %s19 = ssub.s32 %s11, %s18
      %p20 = scmp.eq.s32.totalorder %s19, 0
      %s22 = sadd.s32 %s21, 1
      %s23 = scalar_select %p20, %s21, %s22
      %p26 = pneg %p20
      %p27 = scmp.eq.s32.totalorder %s11, 1
      %p28 = por %p26, %p27
      %p29 = scmp.ne.s32.totalorder %s21, %s24
      %p30 = scmp.eq.s32.totalorder %s11, 0
      %p31 = por %p29, %p30
      %p32 = scmp.ne.s32.totalorder %s21, %s24
      %p33 = scmp.eq.s32.totalorder %s16, 1
      %p34 = por %p32, %p33
      %p35 = scmp.ne.s32.totalorder %s24, %s25
      %p36 = scmp.eq.s32.totalorder %s16, 0
      %p37 = por %p35, %p36
      %p38 = scmp.ne.s32.totalorder %s24, %s25
      %p39 = scmp.eq.s32.totalorder %s17, 1
      %p40 = por %p38, %p39
      %p42 = scmp.ne.s32.totalorder %s25, %s41
      %p43 = scmp.eq.s32.totalorder %s17, 0
      %p44 = por %p42, %p43
      %s46 = sadd.s32 %s45, 1
      %p49 = scmp.eq.s32.totalorder %s11, 1
      %p50 = scmp.ne.s32.totalorder %s45, %s47
      %p51 = scmp.eq.s32.totalorder %s11, 0
      %p52 = por %p50, %p51
      %p53 = scmp.ne.s32.totalorder %s45, %s47
      %p54 = scmp.eq.s32.totalorder %s16, 1
      %p55 = por %p53, %p54
      %p56 = scmp.ne.s32.totalorder %s47, %s48
      %p57 = scmp.eq.s32.totalorder %s16, 0
      %p58 = por %p56, %p57
      %p59 = scmp.ne.s32.totalorder %s47, %s48
      %p60 = scmp.eq.s32.totalorder %s17, 1
      %p61 = por %p59, %p60
      %p63 = scmp.ne.s32.totalorder %s48, %s62
      %p64 = scmp.eq.s32.totalorder %s17, 0
      %p65 = por %p63, %p64
      %s66 = ssub.s32 %s11, %s18
      %p67 = scmp.eq.s32.totalorder %s66, 0
      %s69 = sadd.s32 %s68, 1
      %s70 = scalar_select %p67, %s68, %s69
      %p73 = pneg %p67
      %p74 = scmp.eq.s32.totalorder %s11, 1
      %p75 = por %p73, %p74
      %p76 = scmp.ne.s32.totalorder %s68, %s71
      %p77 = scmp.eq.s32.totalorder %s11, 0
      %p78 = por %p76, %p77
      %p79 = scmp.ne.s32.totalorder %s68, %s71
      %p80 = scmp.eq.s32.totalorder %s16, 1
      %p81 = por %p79, %p80
      %p82 = scmp.ne.s32.totalorder %s71, %s72
      %p83 = scmp.eq.s32.totalorder %s16, 0
      %p84 = por %p82, %p83
      %p85 = scmp.ne.s32.totalorder %s71, %s72
      %p86 = scmp.eq.s32.totalorder %s17, 1
      %p87 = por %p85, %p86
      %p89 = scmp.ne.s32.totalorder %s72, %s88
      %p90 = scmp.eq.s32.totalorder %s17, 0
      %p91 = por %p89, %p90
      %p92 = scmp.le.s32.totalorder 1, %s11
      %p93 = scmp.lt.s32.totalorder %s11, 3
      %p94 = pnand %p92, %p93
      %p95 = pneg %p94
      // Predicated region
      $region9: #{tpu_custom_call.1} parent=5 // pred_check
        _
      $region10: #{tpu_custom_call.1} parent=5 // pred_check_branch
        %97 = sbr.rel (%p94) target = $region12
      $region11: #{tpu_custom_call.1} parent=5 // pred_region
        %s98 = ssub.s32 %s11, 1
        // Predicated region
        $region13: #{tpu_custom_call.1} parent=11 // pred_check
          %p99 = pneg %p58
        $region14: #{tpu_custom_call.1} parent=11 // pred_check_branch
          %101 = sbr.rel (%p99) target = $region16
        $region15: #{tpu_custom_call.1} parent=11 // pred_region
          _
        $region16: #{tpu_custom_call.1} parent=11 // pred_fallthru
          _
      $region12: #{tpu_custom_call.1} parent=5 // pred_fallthru
        _
      %p102 = scmp.lt.s32.totalorder %s11, 2
      // Predicated region
      $region17: #{tpu_custom_call.1} parent=5 // pred_check
        %p103 = pneg %p102
      $region18: #{tpu_custom_call.1} parent=5 // pred_check_branch
        %105 = sbr.rel (%p103) target = $region20
      $region19: #{tpu_custom_call.1} parent=5 // pred_region
        // Predicated region
        $region21: #{tpu_custom_call.1} parent=19 // pred_check
          %p106 = pneg %p31
        $region22: #{tpu_custom_call.1} parent=19 // pred_check_branch
          %108 = sbr.rel (%p106) target = $region24
        $region23: #{tpu_custom_call.1} parent=19 // pred_region
          %p109 = scmp.lt.s32.totalorder %s11, 1
          %s110 = scalar_select %p109, %s11, 1
          %s111 = smul.addr %s110, 8
          %s112 = scalar_lea.vmem %s0, %s111
        $region24: #{tpu_custom_call.1} parent=19 // pred_fallthru
          _
      $region20: #{tpu_custom_call.1} parent=5 // pred_fallthru
        _
      %p113 = scmp.le.s32.totalorder 1, %s11
      %p114 = scmp.lt.s32.totalorder %s11, 3
      %p115 = pnand %p113, %p114
      %p116 = pneg %p115
      // Predicated region
      $region25: #{tpu_custom_call.1} parent=5 // pred_check
        _
      $region26: #{tpu_custom_call.1} parent=5 // pred_check_branch
        %118 = sbr.rel (%p115) target = $region28
      $region27: #{tpu_custom_call.1} parent=5 // pred_region
        %s119 = ssub.s32 %s11, 1
        %p120 = scmp.lt.s32.totalorder %s16, 1
        %s121 = scalar_select %p120, %s16, 1
        %s122 = smul.addr %s121, 8
        %s123 = scalar_lea.vmem %s0, %s122
        %p124 = pneg %p37
        %p125 = pneg %p34
        %p126 = pneg %p58
        %p127 = pneg %p55
        %p128 = pneg %p84
        %p129 = pneg %p81
        %s130 = sand.u32 %s71, 1
        %s131 = scalar_lea.sflag [#allocation3], %s130
        %s132 = sand.u32 %s71, 1
        %s133 = smul.addr %s132, 8
        %s134 = scalar_lea.vmem [#allocation2], %s133
        %p135 = scmp.lt.s32.totalorder %s16, 1
        %s136 = scalar_select %p135, %s16, 1
        %s137 = smul.addr %s136, 8
        %s138 = scalar_lea.vmem %s0, %s137
        %v139 = vld [vmem:[%s138] sm:$0xff]
        %v140 = vlaneseq
        %v141 = vand.u32 %v140, 127
        %142 = vset.pattern.permute.xlu0 0
        %143 = vperm.xlu0 %142, %v139
        %v144 = vpop.permute.xlu0 %143
        %vm145 = vcmp.eq.s32.totalorder %v144, %v141
        %v146 = vsel %vm145, 1, 0
        %v147 = vcvt.s32.f32 %v146
        %v148 = vld [vmem:[%s1] sm:$0xff]
        %v149 = vld [vmem:[%s1 + $0x8] sm:$0xff]
        %vm150 = vcmask 130048
        %v152 = vsel %vm150, %v147, 0
        %154 = vmatprep.subr.mxu0 0.0
        %155 = vmatpush1.msra.mxu0 %v148
        %156 = vmatprep.subr.mxu0 0.0
        %157 = vmatpush1.msra.mxu0 %v149
        %158 = vmatprep.subr.mxu0 0.0
        %159 = vmatpush1.msra.mxu0 0.0
        %160 = vmatprep.subr.mxu0 0.0
        %161 = vmatpush1.msra.mxu0 0.0
        %162 = vmatprep.subr.mxu0 0.0
        %163 = vmatpush1.msra.mxu0 0.0
        %164 = vmatprep.subr.mxu0 0.0
        %165 = vmatpush1.msra.mxu0 0.0
        %166 = vmatprep.subr.mxu0 0.0
        %167 = vmatpush1.msra.mxu0 0.0
        %168 = vmatprep.subr.mxu0 0.0
        %169 = vmatpush1.msra.mxu0 0.0
        %170 = vmatprep.subr.mxu0 0.0
        %171 = vmatpush1.msra.mxu0 0.0
        %172 = vmatprep.subr.mxu0 0.0
        %173 = vmatpush1.msra.mxu0 0.0
        %174 = vmatprep.subr.mxu0 0.0
        %175 = vmatpush1.msra.mxu0 0.0
        %176 = vmatprep.subr.mxu0 0.0
        %177 = vmatpush1.msra.mxu0 0.0
        %178 = vmatprep.subr.mxu0 0.0
        %179 = vmatpush1.msra.mxu0 0.0
        %180 = vmatprep.subr.mxu0 0.0
        %181 = vmatpush1.msra.mxu0 0.0
        %182 = vmatprep.subr.mxu0 0.0
        %183 = vmatpush1.msra.mxu0 0.0
        %184 = vmatprep.subr.mxu0 0.0
        %185 = vmatpush1.msra.mxu0 0.0
        %186 = vmatprep.subr.mxu0 0.0
        %187 = vmatpush1.msra.mxu0 0.0
        %188 = vmatprep.subr.mxu0 0.0
        %189 = vmatpush1.msra.mxu0 0.0
        %190 = vmatprep.subr.mxu0 0.0
        %191 = vmatpush1.msra.mxu0 0.0
        %192 = vmatprep.subr.mxu0 0.0
        %193 = vmatpush1.msra.mxu0 0.0
        %194 = vmatprep.subr.mxu0 0.0
        %195 = vmatpush1.msra.mxu0 0.0
        %196 = vmatprep.subr.mxu0 0.0
        %197 = vmatpush1.msra.mxu0 0.0
        %198 = vmatprep.subr.mxu0 0.0
        %199 = vmatpush1.msra.mxu0 0.0
        %200 = vmatprep.subr.mxu0 0.0
        %201 = vmatpush1.msra.mxu0 0.0
        %202 = vmatprep.subr.mxu0 0.0
        %203 = vmatpush1.msra.mxu0 0.0
        %204 = vmatprep.subr.mxu0 0.0
        %205 = vmatpush1.msra.mxu0 0.0
        %206 = vmatprep.subr.mxu0 0.0
        %207 = vmatpush1.msra.mxu0 0.0
        %208 = vmatprep.subr.mxu0 0.0
        %209 = vmatpush1.msra.mxu0 0.0
        %210 = vmatprep.subr.mxu0 0.0
        %211 = vmatpush1.msra.mxu0 0.0
        %212 = vmatprep.subr.mxu0 0.0
        %213 = vmatpush1.msra.mxu0 0.0
        %214 = vmatprep.subr.mxu0 0.0
        %215 = vmatpush1.msra.mxu0 0.0
        %216 = vmatprep.subr.mxu0 0.0
        %217 = vmatpush1.msra.mxu0 0.0
        %218 = vmatprep.mubr.f32.mxu0 0.0
        %219 = vmatmul.mubr.f32.gmra.mrb[0].mxu0 %v152
        %v220 = vpop.f32.mrb[0].mxu0
        %v221 = vadd.f32 0.0, %v220
        %v222 = vpop.f32.mrb[0].mxu0
        %223 = vdwg.mxu0
        %224 = vst [vmem:[%s134] sm:$0xff] %v221
        %s225 = sand.u32 %s71, 1
        %s226 = scalar_lea.sflag [#allocation3], %s225
        %s227 = sand.u32 %s71, 1
        %s228 = smul.addr %s227, 8
        %s229 = scalar_lea.vmem [#allocation2], %s228
        // Predicated region
        $region29: #{tpu_custom_call.1} parent=27 // pred_check
          %p230 = pneg %p81
        $region30: #{tpu_custom_call.1} parent=27 // pred_check_branch
          %232 = sbr.rel (%p230) target = $region32
        $region31: #{tpu_custom_call.1} parent=27 // pred_region
          %s234 = ssub.s32 128, 128
          %235 = vsyncadd %s226, %s234
          %s236 = smul.addr %s16, 128
          %s237 = scalar_lea.hbm %s2, %s236
          %s239 = sshll.u32 %s229, 4
          %s240 = int_to_ptr.vmem [resolvable:$true] %s239
          %242 = dma.vmem_to_hbm [thread:$0]  %s240, 128, %s237, %s226
        $region32: #{tpu_custom_call.1} parent=27 // pred_fallthru
          _
      $region28: #{tpu_custom_call.1} parent=5 // pred_fallthru
        _
      %p243 = scmp.le.s32.totalorder 2, %s11
      // Predicated region
      $region33: #{tpu_custom_call.1} parent=5 // pred_check
        %p244 = pneg %p243
      $region34: #{tpu_custom_call.1} parent=5 // pred_check_branch
        %246 = sbr.rel (%p244) target = $region36
      $region35: #{tpu_custom_call.1} parent=5 // pred_region
        %s247 = ssub.s32 %s11, 2
        // Predicated region
        $region37: #{tpu_custom_call.1} parent=35 // pred_check
          %p248 = pneg %p87
        $region38: #{tpu_custom_call.1} parent=35 // pred_check_branch
          %250 = sbr.rel (%p248) target = $region40
        $region39: #{tpu_custom_call.1} parent=35 // pred_region
          %s251 = sand.u32 %s72, 1
          %s252 = scalar_lea.sflag [#allocation3], %s251
          %s253 = sand.u32 %s72, 1
          %s254 = smul.addr %s253, 8
          %s255 = scalar_lea.vmem [#allocation2], %s254
          %256 = dma.done %s252, 128
        $region40: #{tpu_custom_call.1} parent=35 // pred_fallthru
          _
      $region36: #{tpu_custom_call.1} parent=5 // pred_fallthru
        _
    $region6: #{tpu_custom_call.1} parent=1 // loop_footer
      %s15 = sadd.s32 1, %s11
    $region7: #{tpu_custom_call.1} parent=1 // loop_footer_branch
      %10 = sbr.rel target = $region3
    $region8: #{tpu_custom_call.1} parent=1 // loop_exit
      _
    %257 = vsyncpa [#allocation3], 1
    %s258 = scalar_lea.sflag [#allocation3], 1
    %259 = vsyncpa %s258, 1

</llo_original>
